<compile_context>
chip_gen: v7x
topology: tpu7x:2x2x1
jax: 0.10.0
libtpu: 0.0.40
codegen_flags: <defaults>
</compile_context>

<pallas_src>
import math

import jax
import jax.numpy as jnp
from jax.experimental import pallas as pl
from jax.experimental.pallas import tpu as pltpu

EPS = 1e-5  # nn.LayerNorm default eps


def _round_up(n, m):
    return ((n + m - 1) // m) * m


def _layer_norm(h, g, b):
    mu = jnp.mean(h, axis=-1, keepdims=True)
    var = jnp.mean((h - mu) ** 2, axis=-1, keepdims=True)
    return (h - mu) * jax.lax.rsqrt(var + EPS) * g + b


# --------------------------------------------------------------------------
# Operand packing (fewer, larger DMA streams per pallas_call)
# --------------------------------------------------------------------------
def _pack_encoder(p):
    d_in, d_main = p['w_lin'].shape
    d_block = p['w0a'].shape[1]
    d_in_pad = _round_up(d_in, 8)
    w_lin = jnp.pad(p['w_lin'], ((0, d_in_pad - d_in), (0, 0)))
    w32 = jnp.concatenate([w_lin, p['w0b'], p['wk']], axis=0)      # [d_in_pad+d_block+d_main, d_main]
    w64 = p['w0a']                                                 # [d_main, d_block]
    rows32 = [p['b_lin'], p['b0b'], p['ln_g'], p['ln_b'], p['bk']]
    b32 = jnp.concatenate(
        rows32 + [jnp.zeros((8 - len(rows32), d_main), jnp.float32)], axis=0)
    b64 = jnp.concatenate([p['b0a'], jnp.zeros((7, d_block), jnp.float32)], axis=0)
    return dict(w32=w32, w64=w64, b32=b32, b64=b64,
                d_in_pad=d_in_pad, d_main=d_main, d_block=d_block)


def _pack_mixer(p):
    d_main = p['wk'].shape[1]
    d_block = p['wt1'].shape[1]
    w32 = jnp.concatenate([p['wt2'], p['w1b']], axis=0)            # [2*d_block, d_main]
    w64 = jnp.concatenate([p['wt1'], p['w1a']], axis=0)            # [2*d_main, d_block]
    rows32 = [p['wle'], p['ble'], p['ln1_g'], p['ln1_b'], p['b1b'],
              p['lnh_g'], p['lnh_b'], p['wh'].T]
    b32 = jnp.concatenate(rows32, axis=0)                          # [8, d_main]
    b64 = jnp.concatenate(
        [p['bt1'], p['b1a'],
         jnp.full((1, d_block), p['bh'][0, 0], jnp.float32),
         jnp.zeros((5, d_block), jnp.float32)], axis=0)            # [8, d_block]
    return dict(w32=w32, w64=w64, b32=b32, b64=b64,
                d_main=d_main, d_block=d_block)


# --------------------------------------------------------------------------
# Kernel 1: row encoder  (Linear + residual MLP block + LayerNorm + K proj)
#   emit_x=True : output slab [tm, 2*d_main] = [x_enc | k]  (query rows, fp32)
#   emit_x=False: output [tm, d_main] = k only               (candidates, bf16)
# --------------------------------------------------------------------------
def _make_encoder_kernel(d_in_pad, d_main, d_block, emit_x):
    o_w0b = d_in_pad
    o_wk = d_in_pad + d_block

    def kernel(x_ref, w32_ref, w64_ref, b32_ref, b64_ref, out_ref):
        b32 = b32_ref[...]
        b_lin, b0b = b32[0:1, :], b32[1:2, :]
        ln_g, ln_b, bk = b32[2:3, :], b32[3:4, :], b32[4:5, :]
        b0a = b64_ref[0:1, :]

        x = x_ref[...]
        h = jnp.dot(x, w32_ref[0:d_in_pad, :],
                    preferred_element_type=jnp.float32) + b_lin
        # encoder block 0 (no pre-norm since it is block index 0); dropout = id
        z = jnp.maximum(
            jnp.dot(h, w64_ref[...], preferred_element_type=jnp.float32) + b0a, 0.0)
        z = jnp.dot(z, w32_ref[o_w0b:o_w0b + d_block, :],
                    preferred_element_type=jnp.float32) + b0b
        h = h + z
        # mixer normalization + K projection
        k = jnp.dot(_layer_norm(h, ln_g, ln_b), w32_ref[o_wk:o_wk + d_main, :],
                    preferred_element_type=jnp.float32) + bk
        if emit_x:
            out_ref[:, 0:d_main] = h
            out_ref[:, d_main:2 * d_main] = k
        else:
            out_ref[...] = k.astype(out_ref.dtype)

    return kernel


def encode_rows(x, enc, *, emit_x, out_dtype, tm=2048, row_align=8):
    """Encode rows of x.  Returns [round_up(N, row_align), d_out] (padded)."""
    N, d_in_pad = x.shape
    d_main, d_block = enc['d_main'], enc['d_block']
    N_pad = _round_up(N, row_align)
    if N_pad != N:
        x = jnp.pad(x, ((0, N_pad - N), (0, 0)))
    tm = max(8, min(tm, N_pad))
    d_out = 2 * d_main if emit_x else d_main
    kernel = _make_encoder_kernel(d_in_pad, d_main, d_block, emit_x)

    def wspec(a):
        return pl.BlockSpec(a.shape, lambda i: (0, 0))

    return pl.pallas_call(
        kernel,
        out_shape=jax.ShapeDtypeStruct((N_pad, d_out), out_dtype),
        grid=(pl.cdiv(N_pad, tm),),
        in_specs=[pl.BlockSpec((tm, d_in_pad), lambda i: (i, 0)),
                  wspec(enc['w32']), wspec(enc['w64']),
                  wspec(enc['b32']), wspec(enc['b64'])],
        out_specs=pl.BlockSpec((tm, d_out), lambda i: (i, 0)),
        compiler_params=pltpu.CompilerParams(dimension_semantics=("parallel",)),
    )(x, enc['w32'], enc['w64'], enc['b32'], enc['b64'])


# --------------------------------------------------------------------------
# Kernel 2: similarities  sims = 2*k.ck - ||ck||^2  ( = -||k-ck||^2 + ||k||^2 )
#   Candidate norms are computed in-kernel via ones @ (ck*ck) (lands lane-major
#   with no transpose).  bf16 MXU operands, fp32 accumulation.
# --------------------------------------------------------------------------
def _sim_kernel(k_ref, ck_ref, out_ref):
    ck = ck_ref[...]                                          # bf16 [tc, d]
    ckf = ck.astype(jnp.float32)
    ones = jnp.ones((1, ckf.shape[1]), jnp.float32)
    csq = jax.lax.dot_general(ones, ckf * ckf, (((1,), (1,)), ((), ())),
                              preferred_element_type=jnp.float32)      # [1, tc]
    cross = jax.lax.dot_general(k_ref[...].astype(jnp.bfloat16), ck,
                                (((1,), (1,)), ((), ())),
                                preferred_element_type=jnp.float32)    # [tb, tc]
    out_ref[...] = 2.0 * cross - csq


def similarities(k, cand_k, n_candidates, tb=256, tc=2048):
    """k:[B,d] fp32, cand_k:[Cp,d] bf16 (Cp multiple of 128) -> sims [B, C]."""
    B, d = k.shape
    B_pad = _round_up(B, 8)
    if B_pad != B:
        k = jnp.pad(k, ((0, B_pad - B), (0, 0)))
    tb = min(tb, B_pad)
    Cp = cand_k.shape[0]
    C_pad = _round_up(Cp, 128)
    if C_pad != Cp:
        cand_k = jnp.pad(cand_k, ((0, C_pad - Cp), (0, 0)))
    tc = min(tc, C_pad)
    sims = pl.pallas_call(
        _sim_kernel,
        out_shape=jax.ShapeDtypeStruct((B_pad, C_pad), jnp.float32),
        grid=(pl.cdiv(B_pad, tb), pl.cdiv(C_pad, tc)),
        in_specs=[pl.BlockSpec((tb, d), lambda i, j: (i, 0)),
                  pl.BlockSpec((tc, d), lambda i, j: (j, 0))],
        out_specs=pl.BlockSpec((tb, tc), lambda i, j: (i, j)),
        compiler_params=pltpu.CompilerParams(
            dimension_semantics=("parallel", "parallel")),
    )(k, cand_k)
    # Padded candidate columns are sliced away BEFORE top_k (they would look
    # artificially close otherwise).
    return sims[:B, :n_candidates]


# --------------------------------------------------------------------------
# Kernel 3: retrieval mixing + predictor block + head (gridded over batch)
#   Similarities are reused from the top_k values (softmax is invariant to the
#   dropped -||k||^2 row constant).
# --------------------------------------------------------------------------
def _make_mixer_kernel(d_main, d_block):
    def kernel(x_ref, k_ref, ck_ref, cy_ref, sim_ref,
               w32_ref, w64_ref, b32_ref, b64_ref, out_ref):
        b32 = b32_ref[...]
        wle, ble = b32[0:1, :], b32[1:2, :]
        ln1_g, ln1_b = b32[2:3, :], b32[3:4, :]
        b1b = b32[4:5, :]
        lnh_g, lnh_b = b32[5:6, :], b32[6:7, :]
        whT = b32[7:8, :]
        b64 = b64_ref[...]
        bt1, b1a = b64[0:1, :], b64[1:2, :]
        bh = b64[2:3, 0:1]

        x = x_ref[...]                    # [tb, d]
        k = k_ref[...]                    # [tb, d]
        ck = ck_ref[...]                  # [tb, S, d] fp32
        cy = cy_ref[...]                  # [tb, S]
        sim = sim_ref[...]                # [tb, S]
        tb, S, d = ck.shape

        # softmax over the context (context_dropout = identity at inference)
        m = jnp.max(sim, axis=-1, keepdims=True)
        e = jnp.exp(sim - m)
        probs = e / jnp.sum(e, axis=-1, keepdims=True)

        # label encoder: nn.Linear(1, d_main) applied to y[..., None]
        y_emb = cy[..., None] * wle + ble                                # [tb,S,d]

        # T(k - context_k): Linear(d,d_block) -> ReLU -> Linear(d_block,d, no bias)
        diff = (k[:, None, :] - ck).reshape(tb * S, d)
        wt1 = w64_ref[0:d_main, :]
        w1a = w64_ref[d_main:2 * d_main, :]
        wt2 = w32_ref[0:d_block, :]
        w1b = w32_ref[d_block:2 * d_block, :]
        t = jnp.maximum(
            jnp.dot(diff, wt1, preferred_element_type=jnp.float32) + bt1, 0.0)
        t = jnp.dot(t, wt2, preferred_element_type=jnp.float32)
        values = y_emb + t.reshape(tb, S, d)

        # context_x = probs @ values  -> elementwise multiply + axis-1 reduce
        x = x + jnp.sum(probs[..., None] * values, axis=1)

        # predictor block (pre-norm residual MLP)
        h = _layer_norm(x, ln1_g, ln1_b)
        z = jnp.maximum(
            jnp.dot(h, w1a, preferred_element_type=jnp.float32) + b1a, 0.0)
        z = jnp.dot(z, w1b, preferred_element_type=jnp.float32) + b1b
        x = x + z

        # head: LayerNorm -> ReLU -> Linear(d_main, 1)
        h = jnp.maximum(_layer_norm(x, lnh_g, lnh_b), 0.0)
        out_ref[...] = jnp.sum(h * whT, axis=-1, keepdims=True) + bh

    return kernel


def mix_and_predict(x_enc, k, ctx_k, ctx_y, sims, mix, tb=512):
    B, d = x_enc.shape
    S = ctx_k.shape[1]
    B_pad = _round_up(B, 8)
    tb = min(tb, B_pad)
    if B_pad != B:
        pad2 = ((0, B_pad - B), (0, 0))
        x_enc = jnp.pad(x_enc, pad2)
        k = jnp.pad(k, pad2)
        sims = jnp.pad(sims, pad2)
        ctx_y = jnp.pad(ctx_y, pad2)
        ctx_k = jnp.pad(ctx_k, ((0, B_pad - B), (0, 0), (0, 0)))
    kernel = _make_mixer_kernel(d, mix['d_block'])

    def wspec(a):
        nd = a.ndim
        return pl.BlockSpec(a.shape, lambda i, nd=nd: (0,) * nd)

    out = pl.pallas_call(
        kernel,
        out_shape=jax.ShapeDtypeStruct((B_pad, 1), jnp.float32),
        grid=(pl.cdiv(B_pad, tb),),
        in_specs=[pl.BlockSpec((tb, d), lambda i: (i, 0)),
                  pl.BlockSpec((tb, d), lambda i: (i, 0)),
                  pl.BlockSpec((tb, S, d), lambda i: (i, 0, 0)),
                  pl.BlockSpec((tb, S), lambda i: (i, 0)),
                  pl.BlockSpec((tb, S), lambda i: (i, 0)),
                  wspec(mix['w32']), wspec(mix['w64']),
                  wspec(mix['b32']), wspec(mix['b64'])],
        out_specs=pl.BlockSpec((tb, 1), lambda i: (i, 0)),
        compiler_params=pltpu.CompilerParams(dimension_semantics=("parallel",)),
    )(x_enc, k, ctx_k, ctx_y, sims,
      mix['w32'], mix['w64'], mix['b32'], mix['b64'])
    return out[:B]


# --------------------------------------------------------------------------
# Full forward (glue in plain JAX)
# --------------------------------------------------------------------------
def tabr_forward(p, x_num, x_bin, cand_num, cand_bin, cand_y, context_size):
    enc = _pack_encoder(p)
    mix = _pack_mixer(p)
    d_main = enc['d_main']
    d_in_pad = enc['d_in_pad']

    x_in = jnp.concatenate([x_num, x_bin], axis=1)
    cand_in = jnp.concatenate([cand_num, cand_bin], axis=1)
    d_in = x_in.shape[1]
    if d_in_pad != d_in:
        x_in = jnp.pad(x_in, ((0, 0), (0, d_in_pad - d_in)))
        cand_in = jnp.pad(cand_in, ((0, 0), (0, d_in_pad - d_in)))
    B, C = x_in.shape[0], cand_in.shape[0]

    # Query rows: one lane-merged fp32 slab [x_enc | k].
    q_slab = encode_rows(x_in, enc, emit_x=True, out_dtype=jnp.float32)
    x_enc = q_slab[:B, 0:d_main]
    k = q_slab[:B, d_main:2 * d_main]

    # Candidate rows: k only (no dead x_enc writeback), stored bf16.
    cand_k = encode_rows(cand_in, enc, emit_x=False, out_dtype=jnp.bfloat16,
                         row_align=128)

    # sims == -||k - ck||^2 up to a per-row constant (top-k/softmax invariant).
    sims = similarities(k, cand_k, C)
    top_sims, ctx_idx = jax.lax.top_k(sims, context_size)
    # TODO(synk): fuse a streaming top-k into the similarity kernel and gather
    #             ctx_k/ctx_y in-kernel via scalar-prefetched ctx_idx.
    ctx_k = cand_k[ctx_idx].astype(jnp.float32)     # [B, S, d]
    ctx_y = cand_y[ctx_idx]                         # [B, S]

    out = mix_and_predict(x_enc, k, ctx_k, ctx_y, top_sims, mix)

    # faiss IndexFlatL2-style squared distances (reconstructed for checks only).
    dists = jnp.sum(k * k, axis=-1, keepdims=True) - sims
    return out, dists, ctx_idx


# --------------------------------------------------------------------------
# Pure-JAX reference (same math, fp32 throughout) for verification
# --------------------------------------------------------------------------
def tabr_reference(p, x_num, x_bin, cand_num, cand_bin, cand_y, ctx_idx):
    x_in = jnp.concatenate([x_num, x_bin], axis=1)
    cand_in = jnp.concatenate([cand_num, cand_bin], axis=1)

    def enc(xin):
        h = xin @ p['w_lin'] + p['b_lin']
        z = jnp.maximum(h @ p['w0a'] + p['b0a'], 0.0) @ p['w0b'] + p['b0b']
        h = h + z
        kk = _layer_norm(h, p['ln_g'], p['ln_b']) @ p['wk'] + p['bk']
        return h, kk

    _, cand_k = enc(cand_in)
    x, k = enc(x_in)
    ck = cand_k[ctx_idx]
    cy = cand_y[ctx_idx]
    sim = (-jnp.sum(k * k, -1, keepdims=True)
           + 2.0 * jnp.sum(k[:, None, :] * ck, -1)
           - jnp.sum(ck * ck, -1))
    probs = jax.nn.softmax(sim, -1)
    y_emb = cy[..., None] * p['wle'] + p['ble']
    diff = k[:, None, :] - ck
    t = jnp.maximum(diff @ p['wt1'] + p['bt1'], 0.0) @ p['wt2']
    values = y_emb + t
    x = x + jnp.sum(probs[..., None] * values, axis=1)
    h = _layer_norm(x, p['ln1_g'], p['ln1_b'])
    x = x + (jnp.maximum(h @ p['w1a'] + p['b1a'], 0.0) @ p['w1b'] + p['b1b'])
    h = jnp.maximum(_layer_norm(x, p['lnh_g'], p['lnh_b']), 0.0)
    return h @ p['wh'] + p['bh']


def reference_distances(p, x_num, x_bin, cand_num, cand_bin):
    x_in = jnp.concatenate([x_num, x_bin], axis=1)
    cand_in = jnp.concatenate([cand_num, cand_bin], axis=1)

    def enc_k(xin):
        h = xin @ p['w_lin'] + p['b_lin']
        z = jnp.maximum(h @ p['w0a'] + p['b0a'], 0.0) @ p['w0b'] + p['b0b']
        h = h + z
        return _layer_norm(h, p['ln_g'], p['ln_b']) @ p['wk'] + p['bk']

    k = enc_k(x_in)
    ck = enc_k(cand_in)
    return (jnp.sum(k * k, -1, keepdims=True)
            - 2.0 * k @ ck.T
            + jnp.sum(ck * ck, -1)[None, :])


# --------------------------------------------------------------------------
# Deterministic parameter init (mirrors the shapes of TabR.__init__)
# --------------------------------------------------------------------------
def init_params(key, d_in, d_main, d_block):
    def lin(k, fan_in, fan_out, bias=True, bound=None):
        if bound is None:
            bound = 1.0 / math.sqrt(fan_in)
        kw, kb = jax.random.split(k)
        w = jax.random.uniform(kw, (fan_in, fan_out), jnp.float32, -bound, bound)
        b = (jax.random.uniform(kb, (1, fan_out), jnp.float32, -bound, bound)
             if bias else None)
        return w, b

    keys = jax.random.split(key, 10)
    p = {}
    p['w_lin'], p['b_lin'] = lin(keys[0], d_in, d_main)          # self.linear
    p['w0a'], p['b0a'] = lin(keys[1], d_main, d_block)           # blocks0[0] lin1
    p['w0b'], p['b0b'] = lin(keys[2], d_block, d_main)           # blocks0[0] lin2
    p['ln_g'] = jnp.ones((1, d_main), jnp.float32)               # mixer LayerNorm
    p['ln_b'] = jnp.zeros((1, d_main), jnp.float32)
    p['wk'], p['bk'] = lin(keys[3], d_main, d_main)              # self.K
    p['wle'], p['ble'] = lin(keys[4], 1, d_main,
                             bound=1.0 / math.sqrt(2.0))         # label_encoder
    p['wt1'], p['bt1'] = lin(keys[5], d_main, d_block)           # T lin1
    p['wt2'], _ = lin(keys[6], d_block, d_main, bias=False)      # T lin2 (no bias)
    p['ln1_g'] = jnp.ones((1, d_main), jnp.float32)              # blocks1[0] prenorm
    p['ln1_b'] = jnp.zeros((1, d_main), jnp.float32)
    p['w1a'], p['b1a'] = lin(keys[7], d_main, d_block)
    p['w1b'], p['b1b'] = lin(keys[8], d_block, d_main)
    p['lnh_g'] = jnp.ones((1, d_main), jnp.float32)              # head LayerNorm
    p['lnh_b'] = jnp.zeros((1, d_main), jnp.float32)
    p['wh'], p['bh'] = lin(keys[9], d_main, 1)                   # head Linear -> d_out=1
    return p


if __name__ == "__main__":
    n_num, n_bin = 6, 2
    d_main, d_multiplier = 32, 2.0
    d_block = int(d_main * d_multiplier)
    d_in = n_num + n_bin
    B = 8            # query batch
    C = 100          # candidate set size (non-multiple of 8/128 -> padding paths)
    context_size = 8

    key = jax.random.PRNGKey(0)
    kp, kxn, kxb, kcn, kcb, kcy = jax.random.split(key, 6)
    params = init_params(kp, d_in, d_main, d_block)

    x_num = jax.random.normal(kxn, (B, n_num), jnp.float32)
    x_bin = (jax.random.uniform(kxb, (B, n_bin)) > 0.5).astype(jnp.float32)
    cand_num = jax.random.normal(kcn, (C, n_num), jnp.float32)
    cand_bin = (jax.random.uniform(kcb, (C, n_bin)) > 0.5).astype(jnp.float32)
    cand_y = jax.random.normal(kcy, (C,), jnp.float32)

    out, dists, ctx_idx = tabr_forward(
        params, x_num, x_bin, cand_num, cand_bin, cand_y, context_size)
    out = jax.block_until_ready(out)

    # correctness checks against the pure-JAX fp32 reference
    ref_dists = reference_distances(params, x_num, x_bin, cand_num, cand_bin)
    ref_out = tabr_reference(params, x_num, x_bin, cand_num, cand_bin, cand_y, ctx_idx)
    assert out.shape == (B, 1)
    assert dists.shape == (B, C)
    assert jnp.allclose(dists, ref_dists, rtol=5e-2, atol=5e-2), \
        float(jnp.max(jnp.abs(dists - ref_dists)))
    assert jnp.allclose(out, ref_out, rtol=5e-2, atol=5e-2), \
        float(jnp.max(jnp.abs(out - ref_out)))

    print("KERNEL_OK")
</pallas_src>

<mosaic_0001>
module attributes {stable_mosaic.version = 11 : i64} {
  func.func @kernel(%arg0: i32, %arg1: memref<8x8xf32, #tpu.memory_space<vmem>>, %arg2: memref<104x32xf32, #tpu.memory_space<vmem>>, %arg3: memref<32x64xf32, #tpu.memory_space<vmem>>, %arg4: memref<8x32xf32, #tpu.memory_space<vmem>>, %arg5: memref<8x64xf32, #tpu.memory_space<vmem>>, %arg6: memref<8x64xf32, #tpu.memory_space<vmem>>) attributes {dimension_semantics = [#tpu.dimension_semantics<parallel>], iteration_bounds = array<i64: 1>, scalar_prefetch = 0 : i64, scratch_operands = 0 : i64, tpu.core_type = #tpu.core_type<tc>, window_params = [{transform_indices = @transform_0, window_bounds = array<i64: 8, 8>}, {pipeline_mode = #tpu.pipeline_mode<synchronous>, transform_indices = @transform_1, window_bounds = array<i64: 104, 32>}, {pipeline_mode = #tpu.pipeline_mode<synchronous>, transform_indices = @transform_2, window_bounds = array<i64: 32, 64>}, {pipeline_mode = #tpu.pipeline_mode<synchronous>, transform_indices = @transform_3, window_bounds = array<i64: 8, 32>}, {pipeline_mode = #tpu.pipeline_mode<synchronous>, transform_indices = @transform_4, window_bounds = array<i64: 8, 64>}, {transform_indices = @transform_5, window_bounds = array<i64: 8, 64>}]} {
    %c0 = arith.constant 0 : index
    %c0_0 = arith.constant 0 : index
    %0 = vector.load %arg4[%c0, %c0_0] : memref<8x32xf32, #tpu.memory_space<vmem>>, vector<8x32xf32>
    %1 = vector.extract_strided_slice %0 {offsets = [0, 0], sizes = [1, 32], strides = [1, 1]} : vector<8x32xf32> to vector<1x32xf32>
    %2 = vector.extract_strided_slice %0 {offsets = [1, 0], sizes = [1, 32], strides = [1, 1]} : vector<8x32xf32> to vector<1x32xf32>
    %3 = vector.extract_strided_slice %0 {offsets = [2, 0], sizes = [1, 32], strides = [1, 1]} : vector<8x32xf32> to vector<1x32xf32>
    %4 = vector.extract_strided_slice %0 {offsets = [3, 0], sizes = [1, 32], strides = [1, 1]} : vector<8x32xf32> to vector<1x32xf32>
    %5 = vector.extract_strided_slice %0 {offsets = [4, 0], sizes = [1, 32], strides = [1, 1]} : vector<8x32xf32> to vector<1x32xf32>
    %c0_1 = arith.constant 0 : index
    %c0_2 = arith.constant 0 : index
    %6 = vector.load %arg5[%c0_1, %c0_2] : memref<8x64xf32, #tpu.memory_space<vmem>>, vector<1x64xf32>
    %c0_3 = arith.constant 0 : index
    %c0_4 = arith.constant 0 : index
    %7 = vector.load %arg1[%c0_3, %c0_4] : memref<8x8xf32, #tpu.memory_space<vmem>>, vector<8x8xf32>
    %c0_5 = arith.constant 0 : index
    %c0_6 = arith.constant 0 : index
    %8 = vector.load %arg2[%c0_5, %c0_6] : memref<104x32xf32, #tpu.memory_space<vmem>>, vector<8x32xf32>
    %cst = arith.constant dense<0.000000e+00> : vector<8x32xf32>
    %9 = tpu.matmul %7, %8, %cst {dimension_numbers = #tpu.dot_dimension_numbers<[1], [0], [0], [1], [0, 0, 1, 1], [], []>} : vector<8x8xf32>, vector<8x32xf32>, vector<8x32xf32> -> vector<8x32xf32>
    %10 = vector.broadcast %1 : vector<1x32xf32> to vector<8x32xf32>
    %11 = arith.addf %9, %10 : vector<8x32xf32>
    %c0_7 = arith.constant 0 : index
    %c0_8 = arith.constant 0 : index
    %12 = vector.load %arg3[%c0_7, %c0_8] : memref<32x64xf32, #tpu.memory_space<vmem>>, vector<32x64xf32>
    %cst_9 = arith.constant dense<0.000000e+00> : vector<8x64xf32>
    %13 = tpu.matmul %11, %12, %cst_9 {dimension_numbers = #tpu.dot_dimension_numbers<[1], [0], [0], [1], [0, 0, 1, 1], [], []>} : vector<8x32xf32>, vector<32x64xf32>, vector<8x64xf32> -> vector<8x64xf32>
    %14 = vector.broadcast %6 : vector<1x64xf32> to vector<8x64xf32>
    %15 = arith.addf %13, %14 : vector<8x64xf32>
    %cst_10 = arith.constant 0.000000e+00 : f32
    %16 = vector.broadcast %cst_10 : f32 to vector<8x64xf32>
    %17 = arith.maximumf %15, %16 : vector<8x64xf32>
    %c8 = arith.constant 8 : index
    %c0_11 = arith.constant 0 : index
    %18 = vector.load %arg2[%c8, %c0_11] : memref<104x32xf32, #tpu.memory_space<vmem>>, vector<64x32xf32>
    %cst_12 = arith.constant dense<0.000000e+00> : vector<8x32xf32>
    %19 = tpu.matmul %17, %18, %cst_12 {dimension_numbers = #tpu.dot_dimension_numbers<[1], [0], [0], [1], [0, 0, 1, 1], [], []>} : vector<8x64xf32>, vector<64x32xf32>, vector<8x32xf32> -> vector<8x32xf32>
    %20 = vector.broadcast %2 : vector<1x32xf32> to vector<8x32xf32>
    %21 = arith.addf %19, %20 : vector<8x32xf32>
    %22 = arith.addf %11, %21 : vector<8x32xf32>
    %cst_13 = arith.constant dense<0.000000e+00> : vector<8xf32>
    %23 = vector.multi_reduction <add>, %22, %cst_13 [1] : vector<8x32xf32> to vector<8xf32>
    %24 = vector.shape_cast %23 : vector<8xf32> to vector<8x1xf32>
    %cst_14 = arith.constant 3.200000e+01 : f32
    %25 = vector.broadcast %cst_14 : f32 to vector<8x1xf32>
    %26 = arith.divf %24, %25 : vector<8x1xf32>
    %27 = vector.broadcast %26 : vector<8x1xf32> to vector<8x32xf32>
    %28 = arith.subf %22, %27 : vector<8x32xf32>
    %29 = arith.mulf %28, %28 : vector<8x32xf32>
    %cst_15 = arith.constant dense<0.000000e+00> : vector<8xf32>
    %30 = vector.multi_reduction <add>, %29, %cst_15 [1] : vector<8x32xf32> to vector<8xf32>
    %31 = vector.shape_cast %30 : vector<8xf32> to vector<8x1xf32>
    %cst_16 = arith.constant 3.200000e+01 : f32
    %32 = vector.broadcast %cst_16 : f32 to vector<8x1xf32>
    %33 = arith.divf %31, %32 : vector<8x1xf32>
    %34 = vector.broadcast %26 : vector<8x1xf32> to vector<8x32xf32>
    %35 = arith.subf %22, %34 : vector<8x32xf32>
    %cst_17 = arith.constant 9.99999974E-6 : f32
    %36 = vector.broadcast %cst_17 : f32 to vector<8x1xf32>
    %37 = arith.addf %33, %36 : vector<8x1xf32>
    %38 = math.rsqrt %37 : vector<8x1xf32>
    %39 = vector.broadcast %38 : vector<8x1xf32> to vector<8x32xf32>
    %40 = arith.mulf %35, %39 : vector<8x32xf32>
    %41 = vector.broadcast %3 : vector<1x32xf32> to vector<8x32xf32>
    %42 = arith.mulf %40, %41 : vector<8x32xf32>
    %43 = vector.broadcast %4 : vector<1x32xf32> to vector<8x32xf32>
    %44 = arith.addf %42, %43 : vector<8x32xf32>
    %c72 = arith.constant 72 : index
    %c0_18 = arith.constant 0 : index
    %45 = vector.load %arg2[%c72, %c0_18] : memref<104x32xf32, #tpu.memory_space<vmem>>, vector<32x32xf32>
    %cst_19 = arith.constant dense<0.000000e+00> : vector<8x32xf32>
    %46 = tpu.matmul %44, %45, %cst_19 {dimension_numbers = #tpu.dot_dimension_numbers<[1], [0], [0], [1], [0, 0, 1, 1], [], []>} : vector<8x32xf32>, vector<32x32xf32>, vector<8x32xf32> -> vector<8x32xf32>
    %47 = vector.broadcast %5 : vector<1x32xf32> to vector<8x32xf32>
    %48 = arith.addf %46, %47 : vector<8x32xf32>
    %c0_20 = arith.constant 0 : index
    %c0_21 = arith.constant 0 : index
    %49 = vector.load %arg6[%c0_20, %c0_21] : memref<8x64xf32, #tpu.memory_space<vmem>>, vector<8x32xf32>
    tpu.vector_store %arg6[%c0_20, %c0_21], %22 {strides = array<i32>} : memref<8x64xf32, #tpu.memory_space<vmem>>, vector<8x32xf32>,
    %c0_22 = arith.constant 0 : index
    %c32 = arith.constant 32 : index
    %50 = vector.load %arg6[%c0_22, %c32] : memref<8x64xf32, #tpu.memory_space<vmem>>, vector<8x32xf32>
    tpu.vector_store %arg6[%c0_22, %c32], %48 {strides = array<i32>} : memref<8x64xf32, #tpu.memory_space<vmem>>, vector<8x32xf32>,
    return
  }
  func.func @transform_0(%arg0: i32) -> (i32, i32) {
    %c0_i32 = arith.constant 0 : i32
    %c0_i32_0 = arith.constant 0 : i32
    return %arg0, %c0_i32 : i32, i32
  }
  func.func @transform_1(%arg0: i32) -> (i32, i32) {
    %c0_i32 = arith.constant 0 : i32
    %c0_i32_0 = arith.constant 0 : i32
    %c0_i32_1 = arith.constant 0 : i32
    return %c0_i32, %c0_i32_0 : i32, i32
  }
  func.func @transform_2(%arg0: i32) -> (i32, i32) {
    %c0_i32 = arith.constant 0 : i32
    %c0_i32_0 = arith.constant 0 : i32
    %c0_i32_1 = arith.constant 0 : i32
    return %c0_i32, %c0_i32_0 : i32, i32
  }
  func.func @transform_3(%arg0: i32) -> (i32, i32) {
    %c0_i32 = arith.constant 0 : i32
    %c0_i32_0 = arith.constant 0 : i32
    %c0_i32_1 = arith.constant 0 : i32
    return %c0_i32, %c0_i32_0 : i32, i32
  }
  func.func @transform_4(%arg0: i32) -> (i32, i32) {
    %c0_i32 = arith.constant 0 : i32
    %c0_i32_0 = arith.constant 0 : i32
    %c0_i32_1 = arith.constant 0 : i32
    return %c0_i32, %c0_i32_0 : i32, i32
  }
  func.func @transform_5(%arg0: i32) -> (i32, i32) {
    %c0_i32 = arith.constant 0 : i32
    %c0_i32_0 = arith.constant 0 : i32
    return %arg0, %c0_i32 : i32, i32
  }
}

</mosaic_0001>

<llo_original>
// kernel: tpu_custom_call.1
$region0: #{tpu_custom_call.1}
  #allocation0 [shape = 'u32[]', space=smem, size = 0x4, offset = 0x4, fixed_abs, tag = 'smem constant byte address 0x4 - core index']
  #allocation1 [shape = 'u32[144,128]{1,0:T(1,128)}', space=vmem, size = 0x12000, scoped, tag = 'internal scratch']
  %s0 = inlined_call_operand.vmem [shape: f32[8,8], index: 0, kind: input, shape index: {}]
  %s1 = inlined_call_operand.vmem [shape: f32[104,32], index: 1, kind: input, shape index: {}]
  %s2 = inlined_call_operand.vmem [shape: f32[32,64], index: 2, kind: input, shape index: {}]
  %s3 = inlined_call_operand.vmem [shape: f32[8,32], index: 3, kind: input, shape index: {}]
  %s4 = inlined_call_operand.vmem [shape: f32[8,64], index: 4, kind: input, shape index: {}]
  %s5 = inlined_call_operand.hbm [shape: f32[8,64], index: 5, kind: output, shape index: {}]
  %s6 = sld [smem:[#allocation0]]
  $region30: #{tpu_custom_call.1} parent=0
    _
  %s8 = ssub.s32 1, %s6
  %s9 = scalar_select 0, %s8, %s6
  $region1: #{tpu_custom_call.1} parent=0
    #allocation2 [shape = 'u8[4096]{0}', space=vmem, size = 0x1000, scoped, tag = 'output window, operand 0, single buffered']
    #allocation3 [shape = 's32[1]{0}', space=sflag, size = 0x4, scoped, tag = 'scoped memory for tpu_custom_call.1']
    %10 = vsyncpa [#allocation3], 0
    // Predicated region
    $region2: #{tpu_custom_call.1} parent=1 // pred_check
      _
    $region3: #{tpu_custom_call.1} parent=1 // pred_check_branch
      %12 = sbr.rel (0) target = $region5
    $region4: #{tpu_custom_call.1} parent=1 // pred_region
      _
    $region5: #{tpu_custom_call.1} parent=1 // pred_fallthru
      _
    // Predicated region
    $region6: #{tpu_custom_call.1} parent=1 // pred_check
      _
    $region7: #{tpu_custom_call.1} parent=1 // pred_check_branch
      %14 = sbr.rel (0) target = $region9
    $region8: #{tpu_custom_call.1} parent=1 // pred_region
      _
    $region9: #{tpu_custom_call.1} parent=1 // pred_fallthru
      _
    // Predicated region
    $region10: #{tpu_custom_call.1} parent=1 // pred_check
      _
    $region11: #{tpu_custom_call.1} parent=1 // pred_check_branch
      %16 = sbr.rel (0) target = $region13
    $region12: #{tpu_custom_call.1} parent=1 // pred_region
      _
    $region13: #{tpu_custom_call.1} parent=1 // pred_fallthru
      _
    // Predicated region
    $region14: #{tpu_custom_call.1} parent=1 // pred_check
      _
    $region15: #{tpu_custom_call.1} parent=1 // pred_check_branch
      %18 = sbr.rel (0) target = $region17
    $region16: #{tpu_custom_call.1} parent=1 // pred_region
      _
    $region17: #{tpu_custom_call.1} parent=1 // pred_fallthru
      _
    // Predicated region
    $region18: #{tpu_custom_call.1} parent=1 // pred_check
      _
    $region19: #{tpu_custom_call.1} parent=1 // pred_check_branch
      %20 = sbr.rel (0) target = $region21
    $region20: #{tpu_custom_call.1} parent=1 // pred_region
      _
    $region21: #{tpu_custom_call.1} parent=1 // pred_fallthru
      _
    %v21 = vld [vmem:[%s3] sm:$0xff]
    %v22 = vld [vmem:[%s4] sm:$0x1]
    %v23 = vld [vmem:[%s0] sm:$0xff]
    %v24 = vld [vmem:[%s1] sm:$0xff]
    %v25 = vlaneseq
    %v26 = vshrl.u32 %v25, 7
    %v27 = vsub.s32 0, %v26
    %v28 = vrot.slane %v21, %v27
    %vm29 = vcmask 64512
    %v31 = vsel %vm29, %v23, 0
    %33 = vmatprep.subr.mxu0 0.0
    %34 = vmatpush1.msra.mxu0 %v24
    %35 = vmatprep.subr.mxu0 0.0
    %36 = vmatpush1.msra.mxu0 0.0
    %37 = vmatprep.subr.mxu0 0.0
    %38 = vmatpush1.msra.mxu0 0.0
    %39 = vmatprep.subr.mxu0 0.0
    %40 = vmatpush1.msra.mxu0 0.0
    %41 = vmatprep.subr.mxu0 0.0
    %42 = vmatpush1.msra.mxu0 0.0
    %43 = vmatprep.subr.mxu0 0.0
    %44 = vmatpush1.msra.mxu0 0.0
    %45 = vmatprep.subr.mxu0 0.0
    %46 = vmatpush1.msra.mxu0 0.0
    %47 = vmatprep.subr.mxu0 0.0
    %48 = vmatpush1.msra.mxu0 0.0
    %49 = vmatprep.subr.mxu0 0.0
    %50 = vmatpush1.msra.mxu0 0.0
    %51 = vmatprep.subr.mxu0 0.0
    %52 = vmatpush1.msra.mxu0 0.0
    %53 = vmatprep.subr.mxu0 0.0
    %54 = vmatpush1.msra.mxu0 0.0
    %55 = vmatprep.subr.mxu0 0.0
    %56 = vmatpush1.msra.mxu0 0.0
    %57 = vmatprep.subr.mxu0 0.0
    %58 = vmatpush1.msra.mxu0 0.0
    %59 = vmatprep.subr.mxu0 0.0
    %60 = vmatpush1.msra.mxu0 0.0
    %61 = vmatprep.subr.mxu0 0.0
    %62 = vmatpush1.msra.mxu0 0.0
    %63 = vmatprep.subr.mxu0 0.0
    %64 = vmatpush1.msra.mxu0 0.0
    %65 = vmatprep.subr.mxu0 0.0
    %66 = vmatpush1.msra.mxu0 0.0
    %67 = vmatprep.subr.mxu0 0.0
    %68 = vmatpush1.msra.mxu0 0.0
    %69 = vmatprep.subr.mxu0 0.0
    %70 = vmatpush1.msra.mxu0 0.0
    %71 = vmatprep.subr.mxu0 0.0
    %72 = vmatpush1.msra.mxu0 0.0
    %73 = vmatprep.subr.mxu0 0.0
    %74 = vmatpush1.msra.mxu0 0.0
    %75 = vmatprep.subr.mxu0 0.0
    %76 = vmatpush1.msra.mxu0 0.0
    %77 = vmatprep.subr.mxu0 0.0
    %78 = vmatpush1.msra.mxu0 0.0
    %79 = vmatprep.subr.mxu0 0.0
    %80 = vmatpush1.msra.mxu0 0.0
    %81 = vmatprep.subr.mxu0 0.0
    %82 = vmatpush1.msra.mxu0 0.0
    %83 = vmatprep.subr.mxu0 0.0
    %84 = vmatpush1.msra.mxu0 0.0
    %85 = vmatprep.subr.mxu0 0.0
    %86 = vmatpush1.msra.mxu0 0.0
    %87 = vmatprep.subr.mxu0 0.0
    %88 = vmatpush1.msra.mxu0 0.0
    %89 = vmatprep.subr.mxu0 0.0
    %90 = vmatpush1.msra.mxu0 0.0
    %91 = vmatprep.subr.mxu0 0.0
    %92 = vmatpush1.msra.mxu0 0.0
    %93 = vmatprep.subr.mxu0 0.0
    %94 = vmatpush1.msra.mxu0 0.0
    %95 = vmatprep.subr.mxu0 0.0
    %96 = vmatpush1.msra.mxu0 0.0
    %97 = vmatprep.mubr.f32.mxu0 0.0
    %98 = vmatmul.mubr.f32.gmra.mrb[0].mxu0 %v31
    %v99 = vpop.f32.mrb[0].mxu0
    %v100 = vadd.f32 %v28, %v99
    %v101 = vpop.f32.mrb[0].mxu0
    %102 = vdwg.mxu0
    %v103 = vld [vmem:[%s2] sm:$0xff]
    %v104 = vld [vmem:[%s2 + $0x8] sm:$0xff]
    %v105 = vld [vmem:[%s2 + $0x10] sm:$0xff]
    %v106 = vld [vmem:[%s2 + $0x18] sm:$0xff]
    %v107 = vlaneseq
    %v108 = vshrl.u32 %v107, 7
    %v109 = vsub.s32 0, %v108
    %v110 = vrot.slane %v22, %v109
    %vm111 = vcmask 261120
    %v113 = vsel %vm111, %v100, 0
    %115 = vmatprep.subr.mxu0 0.0
    %116 = vmatpush1.msra.mxu0 %v103
    %117 = vmatprep.subr.mxu0 0.0
    %118 = vmatpush1.msra.mxu0 %v104
    %119 = vmatprep.subr.mxu0 0.0
    %120 = vmatpush1.msra.mxu0 %v105
    %121 = vmatprep.subr.mxu0 0.0
    %122 = vmatpush1.msra.mxu0 %v106
    %123 = vmatprep.subr.mxu0 0.0
    %124 = vmatpush1.msra.mxu0 0.0
    %125 = vmatprep.subr.mxu0 0.0
    %126 = vmatpush1.msra.mxu0 0.0
    %127 = vmatprep.subr.mxu0 0.0
    %128 = vmatpush1.msra.mxu0 0.0
    %129 = vmatprep.subr.mxu0 0.0
    %130 = vmatpush1.msra.mxu0 0.0
    %131 = vmatprep.subr.mxu0 0.0
    %132 = vmatpush1.msra.mxu0 0.0
    %133 = vmatprep.subr.mxu0 0.0
    %134 = vmatpush1.msra.mxu0 0.0
    %135 = vmatprep.subr.mxu0 0.0
    %136 = vmatpush1.msra.mxu0 0.0
    %137 = vmatprep.subr.mxu0 0.0
    %138 = vmatpush1.msra.mxu0 0.0
    %139 = vmatprep.subr.mxu0 0.0
    %140 = vmatpush1.msra.mxu0 0.0
    %141 = vmatprep.subr.mxu0 0.0
    %142 = vmatpush1.msra.mxu0 0.0
    %143 = vmatprep.subr.mxu0 0.0
    %144 = vmatpush1.msra.mxu0 0.0
    %145 = vmatprep.subr.mxu0 0.0
    %146 = vmatpush1.msra.mxu0 0.0
    %147 = vmatprep.subr.mxu0 0.0
    %148 = vmatpush1.msra.mxu0 0.0
    %149 = vmatprep.subr.mxu0 0.0
    %150 = vmatpush1.msra.mxu0 0.0
    %151 = vmatprep.subr.mxu0 0.0
    %152 = vmatpush1.msra.mxu0 0.0
    %153 = vmatprep.subr.mxu0 0.0
    %154 = vmatpush1.msra.mxu0 0.0
    %155 = vmatprep.subr.mxu0 0.0
    %156 = vmatpush1.msra.mxu0 0.0
    %157 = vmatprep.subr.mxu0 0.0
    %158 = vmatpush1.msra.mxu0 0.0
    %159 = vmatprep.subr.mxu0 0.0
    %160 = vmatpush1.msra.mxu0 0.0
    %161 = vmatprep.subr.mxu0 0.0
    %162 = vmatpush1.msra.mxu0 0.0
    %163 = vmatprep.subr.mxu0 0.0
    %164 = vmatpush1.msra.mxu0 0.0
    %165 = vmatprep.subr.mxu0 0.0
    %166 = vmatpush1.msra.mxu0 0.0
    %167 = vmatprep.subr.mxu0 0.0
    %168 = vmatpush1.msra.mxu0 0.0
    %169 = vmatprep.subr.mxu0 0.0
    %170 = vmatpush1.msra.mxu0 0.0
    %171 = vmatprep.subr.mxu0 0.0
    %172 = vmatpush1.msra.mxu0 0.0
    %173 = vmatprep.subr.mxu0 0.0
    %174 = vmatpush1.msra.mxu0 0.0
    %175 = vmatprep.subr.mxu0 0.0
    %176 = vmatpush1.msra.mxu0 0.0
    %177 = vmatprep.subr.mxu0 0.0
    %178 = vmatpush1.msra.mxu0 0.0
    %179 = vmatprep.mubr.f32.mxu0 0.0
    %180 = vmatmul.mubr.f32.gmra.mrb[0].mxu0 %v113
    %v181 = vpop.f32.mrb[0].mxu0
    %v182 = vadd.f32 %v110, %v181
    %v183 = vpop.f32.mrb[0].mxu0
    %184 = vdwg.mxu0
    %v185 = vmax.f32 %v182, 0.0
    %v186 = vld [vmem:[%s1 + $0x8] sm:$0xff]
    %v187 = vld [vmem:[%s1 + $0x10] sm:$0xff]
    %v188 = vld [vmem:[%s1 + $0x18] sm:$0xff]
    %v189 = vld [vmem:[%s1 + $0x20] sm:$0xff]
    %v190 = vld [vmem:[%s1 + $0x28] sm:$0xff]
    %v191 = vld [vmem:[%s1 + $0x30] sm:$0xff]
    %v192 = vld [vmem:[%s1 + $0x38] sm:$0xff]
    %v193 = vld [vmem:[%s1 + $0x40] sm:$0xff]
    %v194 = vlaneseq
    %v195 = vshrl.u32 %v194, 7
    %v196 = vsub.s32 1, %v195
    %v197 = vrot.slane %v21, %v196
    %vm198 = vcmask 523264
    %v200 = vsel %vm198, %v185, 0
    %202 = vmatprep.subr.mxu0 0.0
    %203 = vmatpush1.msra.mxu0 %v186
    %204 = vmatprep.subr.mxu0 0.0
    %205 = vmatpush1.msra.mxu0 %v187
    %206 = vmatprep.subr.mxu0 0.0
    %207 = vmatpush1.msra.mxu0 %v188
    %208 = vmatprep.subr.mxu0 0.0
    %209 = vmatpush1.msra.mxu0 %v189
    %210 = vmatprep.subr.mxu0 0.0
    %211 = vmatpush1.msra.mxu0 %v190
    %212 = vmatprep.subr.mxu0 0.0
    %213 = vmatpush1.msra.mxu0 %v191
    %214 = vmatprep.subr.mxu0 0.0
    %215 = vmatpush1.msra.mxu0 %v192
    %216 = vmatprep.subr.mxu0 0.0
    %217 = vmatpush1.msra.mxu0 %v193
    %218 = vmatprep.subr.mxu0 0.0
    %219 = vmatpush1.msra.mxu0 0.0
    %220 = vmatprep.subr.mxu0 0.0
    %221 = vmatpush1.msra.mxu0 0.0
    %222 = vmatprep.subr.mxu0 0.0
    %223 = vmatpush1.msra.mxu0 0.0
    %224 = vmatprep.subr.mxu0 0.0
    %225 = vmatpush1.msra.mxu0 0.0
    %226 = vmatprep.subr.mxu0 0.0
    %227 = vmatpush1.msra.mxu0 0.0
    %228 = vmatprep.subr.mxu0 0.0
    %229 = vmatpush1.msra.mxu0 0.0
    %230 = vmatprep.subr.mxu0 0.0
    %231 = vmatpush1.msra.mxu0 0.0
    %232 = vmatprep.subr.mxu0 0.0
    %233 = vmatpush1.msra.mxu0 0.0
    %234 = vmatprep.subr.mxu0 0.0
    %235 = vmatpush1.msra.mxu0 0.0
    %236 = vmatprep.subr.mxu0 0.0
    %237 = vmatpush1.msra.mxu0 0.0
    %238 = vmatprep.subr.mxu0 0.0
    %239 = vmatpush1.msra.mxu0 0.0
    %240 = vmatprep.subr.mxu0 0.0
    %241 = vmatpush1.msra.mxu0 0.0
    %242 = vmatprep.subr.mxu0 0.0
    %243 = vmatpush1.msra.mxu0 0.0
    %244 = vmatprep.subr.mxu0 0.0
    %245 = vmatpush1.msra.mxu0 0.0
    %246 = vmatprep.subr.mxu0 0.0
    %247 = vmatpush1.msra.mxu0 0.0
    %248 = vmatprep.subr.mxu0 0.0
    %249 = vmatpush1.msra.mxu0 0.0
    %250 = vmatprep.subr.mxu0 0.0
    %251 = vmatpush1.msra.mxu0 0.0
    %252 = vmatprep.subr.mxu0 0.0
    %253 = vmatpush1.msra.mxu0 0.0
    %254 = vmatprep.subr.mxu0 0.0
    %255 = vmatpush1.msra.mxu0 0.0
    %256 = vmatprep.subr.mxu0 0.0
    %257 = vmatpush1.msra.mxu0 0.0
    %258 = vmatprep.subr.mxu0 0.0
    %259 = vmatpush1.msra.mxu0 0.0
    %260 = vmatprep.subr.mxu0 0.0
    %261 = vmatpush1.msra.mxu0 0.0
    %262 = vmatprep.subr.mxu0 0.0
    %263 = vmatpush1.msra.mxu0 0.0
    %264 = vmatprep.subr.mxu0 0.0
    %265 = vmatpush1.msra.mxu0 0.0
    %266 = vmatprep.mubr.f32.mxu0 0.0
    %267 = vmatmul.mubr.f32.gmra.mrb[0].mxu0 %v200
    %v268 = vpop.f32.mrb[0].mxu0
    %v269 = vadd.f32 %v197, %v268
    %v270 = vpop.f32.mrb[0].mxu0
    %271 = vdwg.mxu0
    %v272 = vadd.f32 %v100, %v269
    %v273 = vsel %vm111, %v272, 0.0
    %274 = vadd.xlane.f32.xlu0 %v273
    %v275 = vpop.xlane.xlu0 %274
    %v276 = vrcp.pop 32.0
    %v277 = vmul.f32 %v275, %v276
    %v278 = vsub.f32 %v272, %v277
    %v279 = vmul.f32 %v278, %v278
    %v280 = vsel %vm111, %v279, 0.0
    %281 = vadd.xlane.f32.xlu0 %v280
    %v282 = vpop.xlane.xlu0 %281
    %v283 = vmul.f32 %v282, %v276
    %v284 = vadd.f32 %v283, 1e-05
    %v285 = vrsqrt.pop %v284
    %v286 = vmul.f32 %v278, %v285
    %v287 = vlaneseq
    %v288 = vshrl.u32 %v287, 7
    %v289 = vsub.s32 2, %v288
    %v290 = vrot.slane %v21, %v289
    %v291 = vmul.f32 %v286, %v290
    %v292 = vlaneseq
    %v293 = vshrl.u32 %v292, 7
    %v294 = vsub.s32 3, %v293
    %v295 = vrot.slane %v21, %v294
    %v296 = vadd.f32 %v291, %v295
    %v297 = vld [vmem:[%s1 + $0x48] sm:$0xff]
    %v298 = vld [vmem:[%s1 + $0x50] sm:$0xff]
    %v299 = vld [vmem:[%s1 + $0x58] sm:$0xff]
    %v300 = vld [vmem:[%s1 + $0x60] sm:$0xff]
    %v301 = vlaneseq
    %v302 = vshrl.u32 %v301, 7
    %v303 = vsub.s32 4, %v302
    %v304 = vrot.slane %v21, %v303
    %v306 = vsel %vm111, %v296, 0
    %308 = vmatprep.subr.mxu0 0.0
    %309 = vmatpush1.msra.mxu0 %v297
    %310 = vmatprep.subr.mxu0 0.0
    %311 = vmatpush1.msra.mxu0 %v298
    %312 = vmatprep.subr.mxu0 0.0
    %313 = vmatpush1.msra.mxu0 %v299
    %314 = vmatprep.subr.mxu0 0.0
    %315 = vmatpush1.msra.mxu0 %v300
    %316 = vmatprep.subr.mxu0 0.0
    %317 = vmatpush1.msra.mxu0 0.0
    %318 = vmatprep.subr.mxu0 0.0
    %319 = vmatpush1.msra.mxu0 0.0
    %320 = vmatprep.subr.mxu0 0.0
    %321 = vmatpush1.msra.mxu0 0.0
    %322 = vmatprep.subr.mxu0 0.0
    %323 = vmatpush1.msra.mxu0 0.0
    %324 = vmatprep.subr.mxu0 0.0
    %325 = vmatpush1.msra.mxu0 0.0
    %326 = vmatprep.subr.mxu0 0.0
    %327 = vmatpush1.msra.mxu0 0.0
    %328 = vmatprep.subr.mxu0 0.0
    %329 = vmatpush1.msra.mxu0 0.0
    %330 = vmatprep.subr.mxu0 0.0
    %331 = vmatpush1.msra.mxu0 0.0
    %332 = vmatprep.subr.mxu0 0.0
    %333 = vmatpush1.msra.mxu0 0.0
    %334 = vmatprep.subr.mxu0 0.0
    %335 = vmatpush1.msra.mxu0 0.0
    %336 = vmatprep.subr.mxu0 0.0
    %337 = vmatpush1.msra.mxu0 0.0
    %338 = vmatprep.subr.mxu0 0.0
    %339 = vmatpush1.msra.mxu0 0.0
    %340 = vmatprep.subr.mxu0 0.0
    %341 = vmatpush1.msra.mxu0 0.0
    %342 = vmatprep.subr.mxu0 0.0
    %343 = vmatpush1.msra.mxu0 0.0
    %344 = vmatprep.subr.mxu0 0.0
    %345 = vmatpush1.msra.mxu0 0.0
    %346 = vmatprep.subr.mxu0 0.0
    %347 = vmatpush1.msra.mxu0 0.0
    %348 = vmatprep.subr.mxu0 0.0
    %349 = vmatpush1.msra.mxu0 0.0
    %350 = vmatprep.subr.mxu0 0.0
    %351 = vmatpush1.msra.mxu0 0.0
    %352 = vmatprep.subr.mxu0 0.0
    %353 = vmatpush1.msra.mxu0 0.0
    %354 = vmatprep.subr.mxu0 0.0
    %355 = vmatpush1.msra.mxu0 0.0
    %356 = vmatprep.subr.mxu0 0.0
    %357 = vmatpush1.msra.mxu0 0.0
    %358 = vmatprep.subr.mxu0 0.0
    %359 = vmatpush1.msra.mxu0 0.0
    %360 = vmatprep.subr.mxu0 0.0
    %361 = vmatpush1.msra.mxu0 0.0
    %362 = vmatprep.subr.mxu0 0.0
    %363 = vmatpush1.msra.mxu0 0.0
    %364 = vmatprep.subr.mxu0 0.0
    %365 = vmatpush1.msra.mxu0 0.0
    %366 = vmatprep.subr.mxu0 0.0
    %367 = vmatpush1.msra.mxu0 0.0
    %368 = vmatprep.subr.mxu0 0.0
    %369 = vmatpush1.msra.mxu0 0.0
    %370 = vmatprep.subr.mxu0 0.0
    %371 = vmatpush1.msra.mxu0 0.0
    %372 = vmatprep.mubr.f32.mxu0 0.0
    %373 = vmatmul.mubr.f32.gmra.mrb[0].mxu0 %v306
    %v374 = vpop.f32.mrb[0].mxu0
    %v375 = vadd.f32 %v304, %v374
    %v376 = vpop.f32.mrb[0].mxu0
    %377 = vdwg.mxu0
    %378 = vst.msk [vmem:[#allocation2] sm:$0xff] %vm111, %v272
    %380 = vrot.lane.b32.xlu0 %v375, 32
    %v381 = vpop.permute.xlu0 %380
    %vm383 = vcmask 523520
    %384 = vst.msk [vmem:[#allocation2] sm:$0xff] %vm383, %v381
    // Predicated region
    $region22: #{tpu_custom_call.1} parent=1 // pred_check
      _
    $region23: #{tpu_custom_call.1} parent=1 // pred_check_branch
      %386 = sbr.rel (0) target = $region25
    $region24: #{tpu_custom_call.1} parent=1 // pred_region
      %s388 = ssub.s32 128, 128
      %389 = vsyncadd [#allocation3], %s388
      %s391 = sshll.u32 [#allocation2], 4
      %s392 = int_to_ptr.vmem [resolvable:$true] %s391
      %394 = dma.vmem_to_hbm [thread:$0]  %s392, 128, %s5, [#allocation3]
    $region25: #{tpu_custom_call.1} parent=1 // pred_fallthru
      _
    // Predicated region
    $region26: #{tpu_custom_call.1} parent=1 // pred_check
      _
    $region27: #{tpu_custom_call.1} parent=1 // pred_check_branch
      %396 = sbr.rel (0) target = $region29
    $region28: #{tpu_custom_call.1} parent=1 // pred_region
      %397 = dma.done [#allocation3], 128
    $region29: #{tpu_custom_call.1} parent=1 // pred_fallthru
      _
    %398 = vsyncpa [#allocation3], 1

</llo_original>
